<compile_context>
chip_gen: v6e
topology: v6e:2x2x1
jax: 0.10.0
libtpu: 0.0.40
codegen_flags: <defaults>
</compile_context>

<pallas_src>
import jax
import jax.numpy as jnp
from jax.experimental import pallas as pl
from jax.experimental.pallas import tpu as pltpu


def _round_up(v, m):
    return (v + m - 1) // m * m


def _rpn_fused_kernel(xcol_ref, w1_ref, b1_ref, wh_ref, bh_ref, out_ref):
    """One grid step == one tile of im2col rows.

    xcol_ref : (TM, 9*Cin)          im2col rows (compute dtype)
    w1_ref   : (9*Cin, CmidP)       3x3 conv weight, tap-major, Cmid padded
    b1_ref   : (1, CmidP)           f32 bias (padded with zeros)
    wh_ref   : (CmidP, HeadP)       fused [score | bbox] head, zero padded
    bh_ref   : (1, HeadP)           f32 fused bias (padded with zeros)
    out_ref  : (TM, HeadP)          f32 fused output (lane-dense, 128 wide)
    """
    # 3x3 conv as a single contraction over taps*channels, f32 accumulate.
    hid = jnp.dot(xcol_ref[...], w1_ref[...],
                  preferred_element_type=jnp.float32)
    hid = jnp.maximum(hid + b1_ref[...], 0.0)  # bias + ReLU

    # Fused score+bbox head: one lane-dense matmul, one full-width store.
    out = jnp.dot(hid.astype(wh_ref.dtype), wh_ref[...],
                  preferred_element_type=jnp.float32) + bh_ref[...]
    out_ref[...] = out.astype(out_ref.dtype)


def init_rpn_params(key, in_channels, mid_channels, n_anchors, std=0.01):
    """Deterministic normal(0, std) weights, zero biases (normal_init)."""
    k1, k2, k3 = jax.random.split(key, 3)
    # conv1: 3x3, stored tap-major (9, Cin, Cmid), tap index = dy*3 + dx
    w1 = jax.random.normal(k1, (9, in_channels, mid_channels), jnp.float32) * std
    b1 = jnp.zeros((1, mid_channels), jnp.float32)
    ws = jax.random.normal(k2, (mid_channels, n_anchors * 2), jnp.float32) * std
    bs = jnp.zeros((1, n_anchors * 2), jnp.float32)
    wb = jax.random.normal(k3, (mid_channels, n_anchors * 4), jnp.float32) * std
    bb = jnp.zeros((1, n_anchors * 4), jnp.float32)
    return dict(w1=w1, b1=b1, ws=ws, bs=bs, wb=wb, bb=bb)


def rpn_forward(x_nchw, params, n_anchors, *, row_tile=512,
                compute_dtype=jnp.bfloat16):
    """Matches RegionProposalNetwork.forward: returns (rpn_scores, rpn_bboxes)
    with shapes (n, h*w*n_anchors, 2) and (n, h*w*n_anchors, 4)."""
    n, c, h, w = x_nchw.shape
    cmid = params["w1"].shape[-1]
    a2 = n_anchors * 2
    a4 = n_anchors * 4
    head = a2 + a4

    # Lane-friendly padded channel dims.
    cmid_p = _round_up(cmid, 128)
    head_p = _round_up(head, 128)
    k9 = 9 * c

    # --- im2col in the wrapper (NCHW -> NHWC -> pad -> (N*H*W, 9*Cin)) ---
    x = jnp.transpose(x_nchw, (0, 2, 3, 1))
    xpad = jnp.pad(x, ((0, 0), (1, 1), (1, 1), (0, 0)))
    taps = [xpad[:, dy:dy + h, dx:dx + w, :]
            for dy in range(3) for dx in range(3)]
    xcol = jnp.stack(taps, axis=3).reshape(n * h * w, k9)

    # Row tiling over batch*spatial (collapses to one step for small inputs).
    m = n * h * w
    assert row_tile % 8 == 0
    tm = min(row_tile, _round_up(m, 8))
    m_p = _round_up(m, tm)
    if m_p != m:
        xcol = jnp.pad(xcol, ((0, m_p - m), (0, 0)))
    xcol = xcol.astype(compute_dtype)

    # --- weights: fold taps into K, pad channels, fuse the two heads ---
    w1 = params["w1"].reshape(k9, cmid)
    w1_p = jnp.pad(w1, ((0, 0), (0, cmid_p - cmid))).astype(compute_dtype)
    b1_p = jnp.pad(params["b1"], ((0, 0), (0, cmid_p - cmid)))  # f32

    wh = jnp.concatenate([params["ws"], params["wb"]], axis=1)  # (cmid, head)
    wh_p = jnp.pad(wh, ((0, cmid_p - cmid),
                        (0, head_p - head))).astype(compute_dtype)
    bh = jnp.concatenate([params["bs"], params["bb"]], axis=1)
    bh_p = jnp.pad(bh, ((0, 0), (0, head_p - head)))            # f32

    grid = (m_p // tm,)
    out = pl.pallas_call(
        _rpn_fused_kernel,
        out_shape=jax.ShapeDtypeStruct((m_p, head_p), jnp.float32),
        grid_spec=pltpu.PrefetchScalarGridSpec(
            num_scalar_prefetch=0,
            grid=grid,
            in_specs=[
                pl.BlockSpec((tm, k9), lambda i: (i, 0)),
                pl.BlockSpec((k9, cmid_p), lambda i: (0, 0)),
                pl.BlockSpec((1, cmid_p), lambda i: (0, 0)),
                pl.BlockSpec((cmid_p, head_p), lambda i: (0, 0)),
                pl.BlockSpec((1, head_p), lambda i: (0, 0)),
            ],
            out_specs=pl.BlockSpec((tm, head_p), lambda i: (i, 0)),
        ),
        compiler_params=pltpu.CompilerParams(
            dimension_semantics=("parallel",)),
    )(xcol, w1_p, b1_p, wh_p, bh_p)

    # Drop row padding, split fused head, reshape exactly like
    # permute(0,2,3,1).contiguous().view(n, -1, k) in the PyTorch module.
    out = out[:m]
    rpn_scores = out[:, :a2].reshape(n, h * w * n_anchors, 2)
    rpn_bboxes = out[:, a2:a2 + a4].reshape(n, h * w * n_anchors, 4)
    return rpn_scores, rpn_bboxes


def _reference_forward(x_nchw, params, n_anchors):
    """Pure-JAX reference (lax conv) for a correctness check."""
    n, c, h, w = x_nchw.shape
    cmid = params["w1"].shape[-1]
    x = jnp.transpose(x_nchw, (0, 2, 3, 1))
    w1_hwio = params["w1"].reshape(3, 3, c, cmid)
    hid = jax.lax.conv_general_dilated(
        x, w1_hwio, (1, 1), "SAME",
        dimension_numbers=("NHWC", "HWIO", "NHWC")) + params["b1"][0]
    hid = jnp.maximum(hid, 0.0)
    scores = jnp.einsum("nhwc,ck->nhwk", hid, params["ws"]) + params["bs"][0]
    bboxes = jnp.einsum("nhwc,ck->nhwk", hid, params["wb"]) + params["bb"][0]
    return (scores.reshape(n, h * w * n_anchors, 2),
            bboxes.reshape(n, h * w * n_anchors, 4))


if __name__ == "__main__":
    # Small shapes consistent with the module: batch=2, in_channels=4,
    # spatial 16x16, mid_channels=32, 3 ratios x 3 scales = 9 anchors.
    N, CIN, H, W = 2, 4, 16, 16
    CMID = 32
    N_ANCHORS = 3 * 3

    key = jax.random.PRNGKey(0)
    kx, kp = jax.random.split(key)
    x = jax.random.normal(kx, (N, CIN, H, W), jnp.float32)
    params = init_rpn_params(kp, CIN, CMID, N_ANCHORS)

    ref_scores, ref_bboxes = _reference_forward(x, params, N_ANCHORS)

    # f32 compute path: tight numerical check.
    s32, b32 = rpn_forward(x, params, N_ANCHORS, compute_dtype=jnp.float32)
    jax.block_until_ready((s32, b32))
    assert s32.shape == (N, H * W * N_ANCHORS, 2)
    assert b32.shape == (N, H * W * N_ANCHORS, 4)
    assert jnp.allclose(s32, ref_scores, atol=1e-4, rtol=1e-4)
    assert jnp.allclose(b32, ref_bboxes, atol=1e-4, rtol=1e-4)

    # bf16 compute path (default, 2x MXU throughput): looser check.
    s16, b16 = rpn_forward(x, params, N_ANCHORS)
    jax.block_until_ready((s16, b16))
    assert s16.shape == (N, H * W * N_ANCHORS, 2)
    assert b16.shape == (N, H * W * N_ANCHORS, 4)
    assert jnp.allclose(s16, ref_scores, atol=2e-3, rtol=2e-2)
    assert jnp.allclose(b16, ref_bboxes, atol=2e-3, rtol=2e-2)

    print("KERNEL_OK")
</pallas_src>

<mosaic_0001>
module attributes {stable_mosaic.version = 11 : i64} {
  func.func @_rpn_fused_kernel(%arg0: i32, %arg1: memref<512x36xf32, #tpu.memory_space<vmem>>, %arg2: memref<36x128xf32, #tpu.memory_space<vmem>>, %arg3: memref<1x128xf32, #tpu.memory_space<vmem>>, %arg4: memref<128x128xf32, #tpu.memory_space<vmem>>, %arg5: memref<1x128xf32, #tpu.memory_space<vmem>>, %arg6: memref<512x128xf32, #tpu.memory_space<vmem>>) attributes {dimension_semantics = [#tpu.dimension_semantics<parallel>], iteration_bounds = array<i64: 1>, scalar_prefetch = 0 : i64, scratch_operands = 0 : i64, tpu.core_type = #tpu.core_type<tc>, window_params = [{transform_indices = @transform_0, window_bounds = array<i64: 512, 36>}, {pipeline_mode = #tpu.pipeline_mode<synchronous>, transform_indices = @transform_1, window_bounds = array<i64: 36, 128>}, {pipeline_mode = #tpu.pipeline_mode<synchronous>, transform_indices = @transform_2, window_bounds = array<i64: 1, 128>}, {pipeline_mode = #tpu.pipeline_mode<synchronous>, transform_indices = @transform_3, window_bounds = array<i64: 128, 128>}, {pipeline_mode = #tpu.pipeline_mode<synchronous>, transform_indices = @transform_4, window_bounds = array<i64: 1, 128>}, {transform_indices = @transform_5, window_bounds = array<i64: 512, 128>}]} {
    %c0 = arith.constant 0 : index
    %c0_0 = arith.constant 0 : index
    %0 = vector.load %arg1[%c0, %c0_0] : memref<512x36xf32, #tpu.memory_space<vmem>>, vector<512x36xf32>
    %c0_1 = arith.constant 0 : index
    %c0_2 = arith.constant 0 : index
    %1 = vector.load %arg2[%c0_1, %c0_2] : memref<36x128xf32, #tpu.memory_space<vmem>>, vector<36x128xf32>
    %cst = arith.constant dense<0.000000e+00> : vector<512x128xf32>
    %2 = tpu.matmul %0, %1, %cst {dimension_numbers = #tpu.dot_dimension_numbers<[1], [0], [0], [1], [0, 0, 1, 1], [], []>} : vector<512x36xf32>, vector<36x128xf32>, vector<512x128xf32> -> vector<512x128xf32>
    %c0_3 = arith.constant 0 : index
    %c0_4 = arith.constant 0 : index
    %3 = vector.load %arg3[%c0_3, %c0_4] : memref<1x128xf32, #tpu.memory_space<vmem>>, vector<1x128xf32>
    %4 = vector.broadcast %3 : vector<1x128xf32> to vector<512x128xf32>
    %5 = arith.addf %2, %4 : vector<512x128xf32>
    %cst_5 = arith.constant 0.000000e+00 : f32
    %6 = vector.broadcast %cst_5 : f32 to vector<512x128xf32>
    %7 = arith.maximumf %5, %6 : vector<512x128xf32>
    %c0_6 = arith.constant 0 : index
    %c0_7 = arith.constant 0 : index
    %8 = vector.load %arg4[%c0_6, %c0_7] : memref<128x128xf32, #tpu.memory_space<vmem>>, vector<128x128xf32>
    %cst_8 = arith.constant dense<0.000000e+00> : vector<512x128xf32>
    %9 = tpu.matmul %7, %8, %cst_8 {dimension_numbers = #tpu.dot_dimension_numbers<[1], [0], [0], [1], [0, 0, 1, 1], [], []>} : vector<512x128xf32>, vector<128x128xf32>, vector<512x128xf32> -> vector<512x128xf32>
    %c0_9 = arith.constant 0 : index
    %c0_10 = arith.constant 0 : index
    %10 = vector.load %arg5[%c0_9, %c0_10] : memref<1x128xf32, #tpu.memory_space<vmem>>, vector<1x128xf32>
    %11 = vector.broadcast %10 : vector<1x128xf32> to vector<512x128xf32>
    %12 = arith.addf %9, %11 : vector<512x128xf32>
    %c0_11 = arith.constant 0 : index
    %c0_12 = arith.constant 0 : index
    %13 = vector.load %arg6[%c0_11, %c0_12] : memref<512x128xf32, #tpu.memory_space<vmem>>, vector<512x128xf32>
    tpu.vector_store %arg6[%c0_11, %c0_12], %12 {strides = array<i32>} : memref<512x128xf32, #tpu.memory_space<vmem>>, vector<512x128xf32>,
    return
  }
  func.func @transform_0(%arg0: i32) -> (i32, i32) {
    %c0_i32 = arith.constant 0 : i32
    %c0_i32_0 = arith.constant 0 : i32
    return %arg0, %c0_i32 : i32, i32
  }
  func.func @transform_1(%arg0: i32) -> (i32, i32) {
    %c0_i32 = arith.constant 0 : i32
    %c0_i32_0 = arith.constant 0 : i32
    %c0_i32_1 = arith.constant 0 : i32
    return %c0_i32, %c0_i32_0 : i32, i32
  }
  func.func @transform_2(%arg0: i32) -> (i32, i32) {
    %c0_i32 = arith.constant 0 : i32
    %c0_i32_0 = arith.constant 0 : i32
    %c0_i32_1 = arith.constant 0 : i32
    return %c0_i32, %c0_i32_0 : i32, i32
  }
  func.func @transform_3(%arg0: i32) -> (i32, i32) {
    %c0_i32 = arith.constant 0 : i32
    %c0_i32_0 = arith.constant 0 : i32
    %c0_i32_1 = arith.constant 0 : i32
    return %c0_i32, %c0_i32_0 : i32, i32
  }
  func.func @transform_4(%arg0: i32) -> (i32, i32) {
    %c0_i32 = arith.constant 0 : i32
    %c0_i32_0 = arith.constant 0 : i32
    %c0_i32_1 = arith.constant 0 : i32
    return %c0_i32, %c0_i32_0 : i32, i32
  }
  func.func @transform_5(%arg0: i32) -> (i32, i32) {
    %c0_i32 = arith.constant 0 : i32
    %c0_i32_0 = arith.constant 0 : i32
    return %arg0, %c0_i32 : i32, i32
  }
}

</mosaic_0001>

<llo_original>
// kernel: tpu_custom_call.1
$region0: #{tpu_custom_call.1}
  #allocation0 [shape = 'u32[]', space=smem, size = 0x4, offset = 0x4, fixed_abs, tag = 'smem constant byte address 0x4 - core index']
  #allocation1 [shape = 'u32[144,128]{1,0:T(1,128)}', space=vmem, size = 0x12000, scoped, tag = 'internal scratch']
  %s0 = inlined_call_operand.vmem [shape: f32[512,36], index: 0, kind: input, shape index: {}]
  %s1 = inlined_call_operand.vmem [shape: f32[36,128], index: 1, kind: input, shape index: {}]
  %s2 = inlined_call_operand.vmem [shape: f32[1,128], index: 2, kind: input, shape index: {}]
  %s3 = inlined_call_operand.vmem [shape: f32[128,128], index: 3, kind: input, shape index: {}]
  %s4 = inlined_call_operand.vmem [shape: f32[1,128], index: 4, kind: input, shape index: {}]
  %s5 = inlined_call_operand.hbm [shape: f32[512,128], index: 5, kind: output, shape index: {}]
  %s6 = sld [smem:[#allocation0]]
  $region30: #{tpu_custom_call.1} parent=0
    _
  %s8 = ssub.s32 1, %s6
  %s9 = scalar_select 0, %s8, %s6
  $region1: #{tpu_custom_call.1} parent=0
    #allocation2 [shape = 'u8[262144]{0}', space=vmem, size = 0x40000, scoped, tag = 'output window, operand 0, single buffered']
    #allocation3 [shape = 's32[1]{0}', space=sflag, size = 0x4, scoped, tag = 'scoped memory for tpu_custom_call.1']
    %10 = vsyncpa [#allocation3], 0
    // Predicated region
    $region2: #{tpu_custom_call.1} parent=1 // pred_check
      _
    $region3: #{tpu_custom_call.1} parent=1 // pred_check_branch
      %12 = sbr.rel (0) target = $region5
    $region4: #{tpu_custom_call.1} parent=1 // pred_region
      _
    $region5: #{tpu_custom_call.1} parent=1 // pred_fallthru
      _
    // Predicated region
    $region6: #{tpu_custom_call.1} parent=1 // pred_check
      _
    $region7: #{tpu_custom_call.1} parent=1 // pred_check_branch
      %14 = sbr.rel (0) target = $region9
    $region8: #{tpu_custom_call.1} parent=1 // pred_region
      _
    $region9: #{tpu_custom_call.1} parent=1 // pred_fallthru
      _
    // Predicated region
    $region10: #{tpu_custom_call.1} parent=1 // pred_check
      _
    $region11: #{tpu_custom_call.1} parent=1 // pred_check_branch
      %16 = sbr.rel (0) target = $region13
    $region12: #{tpu_custom_call.1} parent=1 // pred_region
      _
    $region13: #{tpu_custom_call.1} parent=1 // pred_fallthru
      _
    // Predicated region
    $region14: #{tpu_custom_call.1} parent=1 // pred_check
      _
    $region15: #{tpu_custom_call.1} parent=1 // pred_check_branch
      %18 = sbr.rel (0) target = $region17
    $region16: #{tpu_custom_call.1} parent=1 // pred_region
      _
    $region17: #{tpu_custom_call.1} parent=1 // pred_fallthru
      _
    // Predicated region
    $region18: #{tpu_custom_call.1} parent=1 // pred_check
      _
    $region19: #{tpu_custom_call.1} parent=1 // pred_check_branch
      %20 = sbr.rel (0) target = $region21
    $region20: #{tpu_custom_call.1} parent=1 // pred_region
      _
    $region21: #{tpu_custom_call.1} parent=1 // pred_fallthru
      _
    %v21 = vld [vmem:[%s0] sm:$0xff]
    %v22 = vld [vmem:[%s0 + $0x8] sm:$0xff]
    %v23 = vld [vmem:[%s0 + $0x10] sm:$0xff]
    %v24 = vld [vmem:[%s0 + $0x18] sm:$0xff]
    %v25 = vld [vmem:[%s0 + $0x20] sm:$0xff]
    %v26 = vld [vmem:[%s0 + $0x28] sm:$0xff]
    %v27 = vld [vmem:[%s0 + $0x30] sm:$0xff]
    %v28 = vld [vmem:[%s0 + $0x38] sm:$0xff]
    %v29 = vld [vmem:[%s0 + $0x40] sm:$0xff]
    %v30 = vld [vmem:[%s0 + $0x48] sm:$0xff]
    %v31 = vld [vmem:[%s0 + $0x50] sm:$0xff]
    %v32 = vld [vmem:[%s0 + $0x58] sm:$0xff]
    %v33 = vld [vmem:[%s0 + $0x60] sm:$0xff]
    %v34 = vld [vmem:[%s0 + $0x68] sm:$0xff]
    %v35 = vld [vmem:[%s0 + $0x70] sm:$0xff]
    %v36 = vld [vmem:[%s0 + $0x78] sm:$0xff]
    %v37 = vld [vmem:[%s0 + $0x80] sm:$0xff]
    %v38 = vld [vmem:[%s0 + $0x88] sm:$0xff]
    %v39 = vld [vmem:[%s0 + $0x90] sm:$0xff]
    %v40 = vld [vmem:[%s0 + $0x98] sm:$0xff]
    %v41 = vld [vmem:[%s0 + $0xa0] sm:$0xff]
    %v42 = vld [vmem:[%s0 + $0xa8] sm:$0xff]
    %v43 = vld [vmem:[%s0 + $0xb0] sm:$0xff]
    %v44 = vld [vmem:[%s0 + $0xb8] sm:$0xff]
    %v45 = vld [vmem:[%s0 + $0xc0] sm:$0xff]
    %v46 = vld [vmem:[%s0 + $0xc8] sm:$0xff]
    %v47 = vld [vmem:[%s0 + $0xd0] sm:$0xff]
    %v48 = vld [vmem:[%s0 + $0xd8] sm:$0xff]
    %v49 = vld [vmem:[%s0 + $0xe0] sm:$0xff]
    %v50 = vld [vmem:[%s0 + $0xe8] sm:$0xff]
    %v51 = vld [vmem:[%s0 + $0xf0] sm:$0xff]
    %v52 = vld [vmem:[%s0 + $0xf8] sm:$0xff]
    %v53 = vld [vmem:[%s0 + $0x100] sm:$0xff]
    %v54 = vld [vmem:[%s0 + $0x108] sm:$0xff]
    %v55 = vld [vmem:[%s0 + $0x110] sm:$0xff]
    %v56 = vld [vmem:[%s0 + $0x118] sm:$0xff]
    %v57 = vld [vmem:[%s0 + $0x120] sm:$0xff]
    %v58 = vld [vmem:[%s0 + $0x128] sm:$0xff]
    %v59 = vld [vmem:[%s0 + $0x130] sm:$0xff]
    %v60 = vld [vmem:[%s0 + $0x138] sm:$0xff]
    %v61 = vld [vmem:[%s0 + $0x140] sm:$0xff]
    %v62 = vld [vmem:[%s0 + $0x148] sm:$0xff]
    %v63 = vld [vmem:[%s0 + $0x150] sm:$0xff]
    %v64 = vld [vmem:[%s0 + $0x158] sm:$0xff]
    %v65 = vld [vmem:[%s0 + $0x160] sm:$0xff]
    %v66 = vld [vmem:[%s0 + $0x168] sm:$0xff]
    %v67 = vld [vmem:[%s0 + $0x170] sm:$0xff]
    %v68 = vld [vmem:[%s0 + $0x178] sm:$0xff]
    %v69 = vld [vmem:[%s0 + $0x180] sm:$0xff]
    %v70 = vld [vmem:[%s0 + $0x188] sm:$0xff]
    %v71 = vld [vmem:[%s0 + $0x190] sm:$0xff]
    %v72 = vld [vmem:[%s0 + $0x198] sm:$0xff]
    %v73 = vld [vmem:[%s0 + $0x1a0] sm:$0xff]
    %v74 = vld [vmem:[%s0 + $0x1a8] sm:$0xff]
    %v75 = vld [vmem:[%s0 + $0x1b0] sm:$0xff]
    %v76 = vld [vmem:[%s0 + $0x1b8] sm:$0xff]
    %v77 = vld [vmem:[%s0 + $0x1c0] sm:$0xff]
    %v78 = vld [vmem:[%s0 + $0x1c8] sm:$0xff]
    %v79 = vld [vmem:[%s0 + $0x1d0] sm:$0xff]
    %v80 = vld [vmem:[%s0 + $0x1d8] sm:$0xff]
    %v81 = vld [vmem:[%s0 + $0x1e0] sm:$0xff]
    %v82 = vld [vmem:[%s0 + $0x1e8] sm:$0xff]
    %v83 = vld [vmem:[%s0 + $0x1f0] sm:$0xff]
    %v84 = vld [vmem:[%s0 + $0x1f8] sm:$0xff]
    %v85 = vld [vmem:[%s1] sm:$0xff]
    %v86 = vld [vmem:[%s1 + $0x8] sm:$0xff]
    %v87 = vld [vmem:[%s1 + $0x10] sm:$0xff]
    %v88 = vld [vmem:[%s1 + $0x18] sm:$0xff]
    %v89 = vld [vmem:[%s1 + $0x20] sm:$0xf]
    %v90 = vld [vmem:[%s2] sm:$0x1]
    %v92 = vlaneseq
    %v93 = vshrl.u32 %v92, 7
    %v94 = vsub.s32 0, %v93
    %v95 = vrot.slane %v90, %v94
    %vm97 = vcmask 293888
    %v99 = vsel %vm97, %v21, 0
    %v102 = vsel %vm97, %v22, 0
    %v105 = vsel %vm97, %v23, 0
    %v108 = vsel %vm97, %v24, 0
    %v111 = vsel %vm97, %v25, 0
    %v114 = vsel %vm97, %v26, 0
    %v117 = vsel %vm97, %v27, 0
    %v120 = vsel %vm97, %v28, 0
    %v123 = vsel %vm97, %v29, 0
    %v126 = vsel %vm97, %v30, 0
    %v129 = vsel %vm97, %v31, 0
    %v132 = vsel %vm97, %v32, 0
    %v135 = vsel %vm97, %v33, 0
    %v138 = vsel %vm97, %v34, 0
    %v141 = vsel %vm97, %v35, 0
    %v144 = vsel %vm97, %v36, 0
    %v147 = vsel %vm97, %v37, 0
    %v150 = vsel %vm97, %v38, 0
    %v153 = vsel %vm97, %v39, 0
    %v156 = vsel %vm97, %v40, 0
    %v159 = vsel %vm97, %v41, 0
    %v162 = vsel %vm97, %v42, 0
    %v165 = vsel %vm97, %v43, 0
    %v168 = vsel %vm97, %v44, 0
    %v171 = vsel %vm97, %v45, 0
    %v174 = vsel %vm97, %v46, 0
    %v177 = vsel %vm97, %v47, 0
    %v180 = vsel %vm97, %v48, 0
    %v183 = vsel %vm97, %v49, 0
    %v186 = vsel %vm97, %v50, 0
    %v189 = vsel %vm97, %v51, 0
    %v192 = vsel %vm97, %v52, 0
    %v195 = vsel %vm97, %v53, 0
    %v198 = vsel %vm97, %v54, 0
    %v201 = vsel %vm97, %v55, 0
    %v204 = vsel %vm97, %v56, 0
    %v207 = vsel %vm97, %v57, 0
    %v210 = vsel %vm97, %v58, 0
    %v213 = vsel %vm97, %v59, 0
    %v216 = vsel %vm97, %v60, 0
    %v219 = vsel %vm97, %v61, 0
    %v222 = vsel %vm97, %v62, 0
    %v225 = vsel %vm97, %v63, 0
    %v228 = vsel %vm97, %v64, 0
    %v231 = vsel %vm97, %v65, 0
    %v234 = vsel %vm97, %v66, 0
    %v237 = vsel %vm97, %v67, 0
    %v240 = vsel %vm97, %v68, 0
    %v243 = vsel %vm97, %v69, 0
    %v246 = vsel %vm97, %v70, 0
    %v249 = vsel %vm97, %v71, 0
    %v252 = vsel %vm97, %v72, 0
    %v255 = vsel %vm97, %v73, 0
    %v258 = vsel %vm97, %v74, 0
    %v261 = vsel %vm97, %v75, 0
    %v264 = vsel %vm97, %v76, 0
    %v267 = vsel %vm97, %v77, 0
    %v270 = vsel %vm97, %v78, 0
    %v273 = vsel %vm97, %v79, 0
    %v276 = vsel %vm97, %v80, 0
    %v279 = vsel %vm97, %v81, 0
    %v282 = vsel %vm97, %v82, 0
    %v285 = vsel %vm97, %v83, 0
    %v288 = vsel %vm97, %v84, 0
    %vm290 = vcmask 1043456
    %v292 = vsel %vm290, %v89, 0
    %294 = vmatprep.subr.mxu0 0.0
    %295 = vmatpush1.msra.mxu0 0.0
    %296 = vmatprep.subr.mxu0 0.0
    %297 = vmatpush1.msra.mxu0 0.0
    %298 = vmatprep.subr.mxu0 0.0
    %299 = vmatpush1.msra.mxu0 0.0
    %300 = vmatprep.subr.mxu0 0.0
    %301 = vmatpush1.msra.mxu0 0.0
    %302 = vmatprep.subr.mxu0 0.0
    %303 = vmatpush1.msra.mxu0 0.0
    %304 = vmatprep.subr.mxu0 0.0
    %305 = vmatpush1.msra.mxu0 0.0
    %306 = vmatprep.subr.mxu0 0.0
    %307 = vmatpush1.msra.mxu0 0.0
    %308 = vmatprep.subr.mxu0 0.0
    %309 = vmatpush1.msra.mxu0 0.0
    %310 = vmatprep.subr.mxu0 0.0
    %311 = vmatpush1.msra.mxu0 0.0
    %312 = vmatprep.subr.mxu0 0.0
    %313 = vmatpush1.msra.mxu0 0.0
    %314 = vmatprep.subr.mxu0 0.0
    %315 = vmatpush1.msra.mxu0 0.0
    %316 = vmatprep.subr.mxu0 0.0
    %317 = vmatpush1.msra.mxu0 %v292
    %318 = vmatprep.subr.mxu0 0.0
    %319 = vmatpush1.msra.mxu0 %v88
    %320 = vmatprep.subr.mxu0 0.0
    %321 = vmatpush1.msra.mxu0 %v87
    %322 = vmatprep.subr.mxu0 0.0
    %323 = vmatpush1.msra.mxu0 %v86
    %324 = vmatprep.subr.mxu0 0.0
    %325 = vmatpush1.msra.mxu0 %v85
    %326 = vmatprep.subr.mxu0 0.0
    %327 = vmatpush2.msra.mxu0 0.0
    %328 = vmatprep.subr.mxu0 0.0
    %329 = vmatpush2.msra.mxu0 0.0
    %330 = vmatprep.subr.mxu0 0.0
    %331 = vmatpush2.msra.mxu0 0.0
    %332 = vmatprep.subr.mxu0 0.0
    %333 = vmatpush2.msra.mxu0 0.0
    %334 = vmatprep.subr.mxu0 0.0
    %335 = vmatpush2.msra.mxu0 0.0
    %336 = vmatprep.subr.mxu0 0.0
    %337 = vmatpush2.msra.mxu0 0.0
    %338 = vmatprep.subr.mxu0 0.0
    %339 = vmatpush2.msra.mxu0 0.0
    %340 = vmatprep.subr.mxu0 0.0
    %341 = vmatpush2.msra.mxu0 0.0
    %342 = vmatprep.subr.mxu0 0.0
    %343 = vmatpush2.msra.mxu0 0.0
    %344 = vmatprep.subr.mxu0 0.0
    %345 = vmatpush2.msra.mxu0 0.0
    %346 = vmatprep.subr.mxu0 0.0
    %347 = vmatpush2.msra.mxu0 0.0
    %348 = vmatprep.subr.mxu0 0.0
    %349 = vmatpush2.msra.mxu0 0.0
    %350 = vmatprep.subr.mxu0 0.0
    %351 = vmatpush2.msra.mxu0 0.0
    %352 = vmatprep.subr.mxu0 0.0
    %353 = vmatpush2.msra.mxu0 0.0
    %354 = vmatprep.subr.mxu0 0.0
    %355 = vmatpush2.msra.mxu0 0.0
    %356 = vmatprep.subr.mxu0 0.0
    %357 = vmatpush2.msra.mxu0 0.0
    %358 = vmatprep.mubr.f32.mxu0 0.0
    %359 = vmatmul.mubr.f32.gmra.mxu0 %v99
    %v360 = vpop.f32.mrf.mxu0
    %v361 = vadd.f32 %v95, %v360
    %v362 = vpop.f32.mrf.mxu0
    %363 = vmatprep.mubr.f32.mxu0 0.0
    %364 = vmatmul.mubr.f32.gmra.mxu0 %v102
    %v365 = vpop.f32.mrf.mxu0
    %v366 = vadd.f32 %v95, %v365
    %v367 = vpop.f32.mrf.mxu0
    %368 = vmatprep.mubr.f32.mxu0 0.0
    %369 = vmatmul.mubr.f32.gmra.mxu0 %v105
    %v370 = vpop.f32.mrf.mxu0
    %v371 = vadd.f32 %v95, %v370
    %v372 = vpop.f32.mrf.mxu0
    %373 = vmatprep.mubr.f32.mxu0 0.0
    %374 = vmatmul.mubr.f32.gmra.mxu0 %v108
    %v375 = vpop.f32.mrf.mxu0
    %v376 = vadd.f32 %v95, %v375
    %v377 = vpop.f32.mrf.mxu0
    %378 = vmatprep.mubr.f32.mxu0 0.0
    %379 = vmatmul.mubr.f32.gmra.mxu0 %v111
    %v380 = vpop.f32.mrf.mxu0
    %v381 = vadd.f32 %v95, %v380
    %v382 = vpop.f32.mrf.mxu0
    %383 = vmatprep.mubr.f32.mxu0 0.0
    %384 = vmatmul.mubr.f32.gmra.mxu0 %v114
    %v385 = vpop.f32.mrf.mxu0
    %v386 = vadd.f32 %v95, %v385
    %v387 = vpop.f32.mrf.mxu0
    %388 = vmatprep.mubr.f32.mxu0 0.0
    %389 = vmatmul.mubr.f32.gmra.mxu0 %v117
    %v390 = vpop.f32.mrf.mxu0
    %v391 = vadd.f32 %v95, %v390
    %v392 = vpop.f32.mrf.mxu0
    %393 = vmatprep.mubr.f32.mxu0 0.0
    %394 = vmatmul.mubr.f32.gmra.mxu0 %v120
    %v395 = vpop.f32.mrf.mxu0
    %v396 = vadd.f32 %v95, %v395
    %v397 = vpop.f32.mrf.mxu0
    %398 = vmatprep.mubr.f32.mxu0 0.0
    %399 = vmatmul.mubr.f32.gmra.mxu0 %v123
    %v400 = vpop.f32.mrf.mxu0
    %v401 = vadd.f32 %v95, %v400
    %v402 = vpop.f32.mrf.mxu0
    %403 = vmatprep.mubr.f32.mxu0 0.0
    %404 = vmatmul.mubr.f32.gmra.mxu0 %v126
    %v405 = vpop.f32.mrf.mxu0
    %v406 = vadd.f32 %v95, %v405
    %v407 = vpop.f32.mrf.mxu0
    %408 = vmatprep.mubr.f32.mxu0 0.0
    %409 = vmatmul.mubr.f32.gmra.mxu0 %v129
    %v410 = vpop.f32.mrf.mxu0
    %v411 = vadd.f32 %v95, %v410
    %v412 = vpop.f32.mrf.mxu0
    %413 = vmatprep.mubr.f32.mxu0 0.0
    %414 = vmatmul.mubr.f32.gmra.mxu0 %v132
    %v415 = vpop.f32.mrf.mxu0
    %v416 = vadd.f32 %v95, %v415
    %v417 = vpop.f32.mrf.mxu0
    %418 = vmatprep.mubr.f32.mxu0 0.0
    %419 = vmatmul.mubr.f32.gmra.mxu0 %v135
    %v420 = vpop.f32.mrf.mxu0
    %v421 = vadd.f32 %v95, %v420
    %v422 = vpop.f32.mrf.mxu0
    %423 = vmatprep.mubr.f32.mxu0 0.0
    %424 = vmatmul.mubr.f32.gmra.mxu0 %v138
    %v425 = vpop.f32.mrf.mxu0
    %v426 = vadd.f32 %v95, %v425
    %v427 = vpop.f32.mrf.mxu0
    %428 = vmatprep.mubr.f32.mxu0 0.0
    %429 = vmatmul.mubr.f32.gmra.mxu0 %v141
    %v430 = vpop.f32.mrf.mxu0
    %v431 = vadd.f32 %v95, %v430
    %v432 = vpop.f32.mrf.mxu0
    %433 = vmatprep.mubr.f32.mxu0 0.0
    %434 = vmatmul.mubr.f32.gmra.mxu0 %v144
    %v435 = vpop.f32.mrf.mxu0
    %v436 = vadd.f32 %v95, %v435
    %v437 = vpop.f32.mrf.mxu0
    %438 = vmatprep.mubr.f32.mxu0 0.0
    %439 = vmatmul.mubr.f32.gmra.mxu0 %v147
    %v440 = vpop.f32.mrf.mxu0
    %v441 = vadd.f32 %v95, %v440
    %v442 = vpop.f32.mrf.mxu0
    %443 = vmatprep.mubr.f32.mxu0 0.0
    %444 = vmatmul.mubr.f32.gmra.mxu0 %v150
    %v445 = vpop.f32.mrf.mxu0
    %v446 = vadd.f32 %v95, %v445
    %v447 = vpop.f32.mrf.mxu0
    %448 = vmatprep.mubr.f32.mxu0 0.0
    %449 = vmatmul.mubr.f32.gmra.mxu0 %v153
    %v450 = vpop.f32.mrf.mxu0
    %v451 = vadd.f32 %v95, %v450
    %v452 = vpop.f32.mrf.mxu0
    %453 = vmatprep.mubr.f32.mxu0 0.0
    %454 = vmatmul.mubr.f32.gmra.mxu0 %v156
    %v455 = vpop.f32.mrf.mxu0
    %v456 = vadd.f32 %v95, %v455
    %v457 = vpop.f32.mrf.mxu0
    %458 = vmatprep.mubr.f32.mxu0 0.0
    %459 = vmatmul.mubr.f32.gmra.mxu0 %v159
    %v460 = vpop.f32.mrf.mxu0
    %v461 = vadd.f32 %v95, %v460
    %v462 = vpop.f32.mrf.mxu0
    %463 = vmatprep.mubr.f32.mxu0 0.0
    %464 = vmatmul.mubr.f32.gmra.mxu0 %v162
    %v465 = vpop.f32.mrf.mxu0
    %v466 = vadd.f32 %v95, %v465
    %v467 = vpop.f32.mrf.mxu0
    %468 = vmatprep.mubr.f32.mxu0 0.0
    %469 = vmatmul.mubr.f32.gmra.mxu0 %v165
    %v470 = vpop.f32.mrf.mxu0
    %v471 = vadd.f32 %v95, %v470
    %v472 = vpop.f32.mrf.mxu0
    %473 = vmatprep.mubr.f32.mxu0 0.0
    %474 = vmatmul.mubr.f32.gmra.mxu0 %v168
    %v475 = vpop.f32.mrf.mxu0
    %v476 = vadd.f32 %v95, %v475
    %v477 = vpop.f32.mrf.mxu0
    %478 = vmatprep.mubr.f32.mxu0 0.0
    %479 = vmatmul.mubr.f32.gmra.mxu0 %v171
    %v480 = vpop.f32.mrf.mxu0
    %v481 = vadd.f32 %v95, %v480
    %v482 = vpop.f32.mrf.mxu0
    %483 = vmatprep.mubr.f32.mxu0 0.0
    %484 = vmatmul.mubr.f32.gmra.mxu0 %v174
    %v485 = vpop.f32.mrf.mxu0
    %v486 = vadd.f32 %v95, %v485
    %v487 = vpop.f32.mrf.mxu0
    %488 = vmatprep.mubr.f32.mxu0 0.0
    %489 = vmatmul.mubr.f32.gmra.mxu0 %v177
    %v490 = vpop.f32.mrf.mxu0
    %v491 = vadd.f32 %v95, %v490
    %v492 = vpop.f32.mrf.mxu0
    %493 = vmatprep.mubr.f32.mxu0 0.0
    %494 = vmatmul.mubr.f32.gmra.mxu0 %v180
    %v495 = vpop.f32.mrf.mxu0
    %v496 = vadd.f32 %v95, %v495
    %v497 = vpop.f32.mrf.mxu0
    %498 = vmatprep.mubr.f32.mxu0 0.0
    %499 = vmatmul.mubr.f32.gmra.mxu0 %v183
    %v500 = vpop.f32.mrf.mxu0
    %v501 = vadd.f32 %v95, %v500
    %v502 = vpop.f32.mrf.mxu0
    %503 = vmatprep.mubr.f32.mxu0 0.0
    %504 = vmatmul.mubr.f32.gmra.mxu0 %v186
    %v505 = vpop.f32.mrf.mxu0
    %v506 = vadd.f32 %v95, %v505
    %v507 = vpop.f32.mrf.mxu0
    %508 = vmatprep.mubr.f32.mxu0 0.0
    %509 = vmatmul.mubr.f32.gmra.mxu0 %v189
    %v510 = vpop.f32.mrf.mxu0
    %v511 = vadd.f32 %v95, %v510
    %v512 = vpop.f32.mrf.mxu0
    %513 = vmatprep.mubr.f32.mxu0 0.0
    %514 = vmatmul.mubr.f32.gmra.mxu0 %v192
    %v515 = vpop.f32.mrf.mxu0
    %v516 = vadd.f32 %v95, %v515
    %v517 = vpop.f32.mrf.mxu0
    %518 = vmatprep.mubr.f32.mxu0 0.0
    %519 = vmatmul.mubr.f32.gmra.mxu0 %v195
    %v520 = vpop.f32.mrf.mxu0
    %v521 = vadd.f32 %v95, %v520
    %v522 = vpop.f32.mrf.mxu0
    %523 = vmatprep.mubr.f32.mxu0 0.0
    %524 = vmatmul.mubr.f32.gmra.mxu0 %v198
    %v525 = vpop.f32.mrf.mxu0
    %v526 = vadd.f32 %v95, %v525
    %v527 = vpop.f32.mrf.mxu0
    %528 = vmatprep.mubr.f32.mxu0 0.0
    %529 = vmatmul.mubr.f32.gmra.mxu0 %v201
    %v530 = vpop.f32.mrf.mxu0
    %v531 = vadd.f32 %v95, %v530
    %v532 = vpop.f32.mrf.mxu0
    %533 = vmatprep.mubr.f32.mxu0 0.0
    %534 = vmatmul.mubr.f32.gmra.mxu0 %v204
    %v535 = vpop.f32.mrf.mxu0
    %v536 = vadd.f32 %v95, %v535
    %v537 = vpop.f32.mrf.mxu0
    %538 = vmatprep.mubr.f32.mxu0 0.0
    %539 = vmatmul.mubr.f32.gmra.mxu0 %v207
    %v540 = vpop.f32.mrf.mxu0
    %v541 = vadd.f32 %v95, %v540
    %v542 = vpop.f32.mrf.mxu0
    %543 = vmatprep.mubr.f32.mxu0 0.0
    %544 = vmatmul.mubr.f32.gmra.mxu0 %v210
    %v545 = vpop.f32.mrf.mxu0
    %v546 = vadd.f32 %v95, %v545
    %v547 = vpop.f32.mrf.mxu0
    %548 = vmatprep.mubr.f32.mxu0 0.0
    %549 = vmatmul.mubr.f32.gmra.mxu0 %v213
    %v550 = vpop.f32.mrf.mxu0
    %v551 = vadd.f32 %v95, %v550
    %v552 = vpop.f32.mrf.mxu0
    %553 = vmatprep.mubr.f32.mxu0 0.0
    %554 = vmatmul.mubr.f32.gmra.mxu0 %v216
    %v555 = vpop.f32.mrf.mxu0
    %v556 = vadd.f32 %v95, %v555
    %v557 = vpop.f32.mrf.mxu0
    %558 = vmatprep.mubr.f32.mxu0 0.0
    %559 = vmatmul.mubr.f32.gmra.mxu0 %v219
    %v560 = vpop.f32.mrf.mxu0
    %v561 = vadd.f32 %v95, %v560
    %v562 = vpop.f32.mrf.mxu0
    %563 = vmatprep.mubr.f32.mxu0 0.0
    %564 = vmatmul.mubr.f32.gmra.mxu0 %v222
    %v565 = vpop.f32.mrf.mxu0
    %v566 = vadd.f32 %v95, %v565
    %v567 = vpop.f32.mrf.mxu0
    %568 = vmatprep.mubr.f32.mxu0 0.0
    %569 = vmatmul.mubr.f32.gmra.mxu0 %v225
    %v570 = vpop.f32.mrf.mxu0
    %v571 = vadd.f32 %v95, %v570
    %v572 = vpop.f32.mrf.mxu0
    %573 = vmatprep.mubr.f32.mxu0 0.0
    %574 = vmatmul.mubr.f32.gmra.mxu0 %v228
    %v575 = vpop.f32.mrf.mxu0
    %v576 = vadd.f32 %v95, %v575
    %v577 = vpop.f32.mrf.mxu0
    %578 = vmatprep.mubr.f32.mxu0 0.0
    %579 = vmatmul.mubr.f32.gmra.mxu0 %v231
    %v580 = vpop.f32.mrf.mxu0
    %v581 = vadd.f32 %v95, %v580
    %v582 = vpop.f32.mrf.mxu0
    %583 = vmatprep.mubr.f32.mxu0 0.0
    %584 = vmatmul.mubr.f32.gmra.mxu0 %v234
    %v585 = vpop.f32.mrf.mxu0
    %v586 = vadd.f32 %v95, %v585
    %v587 = vpop.f32.mrf.mxu0
    %588 = vmatprep.mubr.f32.mxu0 0.0
    %589 = vmatmul.mubr.f32.gmra.mxu0 %v237
    %v590 = vpop.f32.mrf.mxu0
    %v591 = vadd.f32 %v95, %v590
    %v592 = vpop.f32.mrf.mxu0
    %593 = vmatprep.mubr.f32.mxu0 0.0
    %594 = vmatmul.mubr.f32.gmra.mxu0 %v240
    %v595 = vpop.f32.mrf.mxu0
    %v596 = vadd.f32 %v95, %v595
    %v597 = vpop.f32.mrf.mxu0
    %598 = vmatprep.mubr.f32.mxu0 0.0
    %599 = vmatmul.mubr.f32.gmra.mxu0 %v243
    %v600 = vpop.f32.mrf.mxu0
    %v601 = vadd.f32 %v95, %v600
    %v602 = vpop.f32.mrf.mxu0
    %603 = vmatprep.mubr.f32.mxu0 0.0
    %604 = vmatmul.mubr.f32.gmra.mxu0 %v246
    %v605 = vpop.f32.mrf.mxu0
    %v606 = vadd.f32 %v95, %v605
    %v607 = vpop.f32.mrf.mxu0
    %608 = vmatprep.mubr.f32.mxu0 0.0
    %609 = vmatmul.mubr.f32.gmra.mxu0 %v249
    %v610 = vpop.f32.mrf.mxu0
    %v611 = vadd.f32 %v95, %v610
    %v612 = vpop.f32.mrf.mxu0
    %613 = vmatprep.mubr.f32.mxu0 0.0
    %614 = vmatmul.mubr.f32.gmra.mxu0 %v252
    %v615 = vpop.f32.mrf.mxu0
    %v616 = vadd.f32 %v95, %v615
    %v617 = vpop.f32.mrf.mxu0
    %618 = vmatprep.mubr.f32.mxu0 0.0
    %619 = vmatmul.mubr.f32.gmra.mxu0 %v255
    %v620 = vpop.f32.mrf.mxu0
    %v621 = vadd.f32 %v95, %v620
    %v622 = vpop.f32.mrf.mxu0
    %623 = vmatprep.mubr.f32.mxu0 0.0
    %624 = vmatmul.mubr.f32.gmra.mxu0 %v258
    %v625 = vpop.f32.mrf.mxu0
    %v626 = vadd.f32 %v95, %v625
    %v627 = vpop.f32.mrf.mxu0
    %628 = vmatprep.mubr.f32.mxu0 0.0
    %629 = vmatmul.mubr.f32.gmra.mxu0 %v261
    %v630 = vpop.f32.mrf.mxu0
    %v631 = vadd.f32 %v95, %v630
    %v632 = vpop.f32.mrf.mxu0
    %633 = vmatprep.mubr.f32.mxu0 0.0
    %634 = vmatmul.mubr.f32.gmra.mxu0 %v264
    %v635 = vpop.f32.mrf.mxu0
    %v636 = vadd.f32 %v95, %v635
    %v637 = vpop.f32.mrf.mxu0
    %638 = vmatprep.mubr.f32.mxu0 0.0
    %639 = vmatmul.mubr.f32.gmra.mxu0 %v267
    %v640 = vpop.f32.mrf.mxu0
    %v641 = vadd.f32 %v95, %v640
    %v642 = vpop.f32.mrf.mxu0
    %643 = vmatprep.mubr.f32.mxu0 0.0
    %644 = vmatmul.mubr.f32.gmra.mxu0 %v270
    %v645 = vpop.f32.mrf.mxu0
    %v646 = vadd.f32 %v95, %v645
    %v647 = vpop.f32.mrf.mxu0
    %648 = vmatprep.mubr.f32.mxu0 0.0
    %649 = vmatmul.mubr.f32.gmra.mxu0 %v273
    %v650 = vpop.f32.mrf.mxu0
    %v651 = vadd.f32 %v95, %v650
    %v652 = vpop.f32.mrf.mxu0
    %653 = vmatprep.mubr.f32.mxu0 0.0
    %654 = vmatmul.mubr.f32.gmra.mxu0 %v276
    %v655 = vpop.f32.mrf.mxu0
    %v656 = vadd.f32 %v95, %v655
    %v657 = vpop.f32.mrf.mxu0
    %658 = vmatprep.mubr.f32.mxu0 0.0
    %659 = vmatmul.mubr.f32.gmra.mxu0 %v279
    %v660 = vpop.f32.mrf.mxu0
    %v661 = vadd.f32 %v95, %v660
    %v662 = vpop.f32.mrf.mxu0
    %663 = vmatprep.mubr.f32.mxu0 0.0
    %664 = vmatmul.mubr.f32.gmra.mxu0 %v282
    %v665 = vpop.f32.mrf.mxu0
    %v666 = vadd.f32 %v95, %v665
    %v667 = vpop.f32.mrf.mxu0
    %668 = vmatprep.mubr.f32.mxu0 0.0
    %669 = vmatmul.mubr.f32.gmra.mxu0 %v285
    %v670 = vpop.f32.mrf.mxu0
    %v671 = vadd.f32 %v95, %v670
    %v672 = vpop.f32.mrf.mxu0
    %673 = vmatprep.mubr.f32.mxu0 0.0
    %674 = vmatmul.mubr.f32.gmra.mxu0 %v288
    %v675 = vpop.f32.mrf.mxu0
    %v676 = vadd.f32 %v95, %v675
    %v677 = vpop.f32.mrf.mxu0
    %678 = vdwg.mxu0
    %v679 = vmax.f32 %v361, 0.0
    %v680 = vmax.f32 %v366, 0.0
    %v681 = vmax.f32 %v371, 0.0
    %v682 = vmax.f32 %v376, 0.0
    %v683 = vmax.f32 %v381, 0.0
    %v684 = vmax.f32 %v386, 0.0
    %v685 = vmax.f32 %v391, 0.0
    %v686 = vmax.f32 %v396, 0.0
    %v687 = vmax.f32 %v401, 0.0
    %v688 = vmax.f32 %v406, 0.0
    %v689 = vmax.f32 %v411, 0.0
    %v690 = vmax.f32 %v416, 0.0
    %v691 = vmax.f32 %v421, 0.0
    %v692 = vmax.f32 %v426, 0.0
    %v693 = vmax.f32 %v431, 0.0
    %v694 = vmax.f32 %v436, 0.0
    %v695 = vmax.f32 %v441, 0.0
    %v696 = vmax.f32 %v446, 0.0
    %v697 = vmax.f32 %v451, 0.0
    %v698 = vmax.f32 %v456, 0.0
    %v699 = vmax.f32 %v461, 0.0
    %v700 = vmax.f32 %v466, 0.0
    %v701 = vmax.f32 %v471, 0.0
    %v702 = vmax.f32 %v476, 0.0
    %v703 = vmax.f32 %v481, 0.0
    %v704 = vmax.f32 %v486, 0.0
    %v705 = vmax.f32 %v491, 0.0
    %v706 = vmax.f32 %v496, 0.0
    %v707 = vmax.f32 %v501, 0.0
    %v708 = vmax.f32 %v506, 0.0
    %v709 = vmax.f32 %v511, 0.0
    %v710 = vmax.f32 %v516, 0.0
    %v711 = vmax.f32 %v521, 0.0
    %v712 = vmax.f32 %v526, 0.0
    %v713 = vmax.f32 %v531, 0.0
    %v714 = vmax.f32 %v536, 0.0
    %v715 = vmax.f32 %v541, 0.0
    %v716 = vmax.f32 %v546, 0.0
    %v717 = vmax.f32 %v551, 0.0
    %v718 = vmax.f32 %v556, 0.0
    %v719 = vmax.f32 %v561, 0.0
    %v720 = vmax.f32 %v566, 0.0
    %v721 = vmax.f32 %v571, 0.0
    %v722 = vmax.f32 %v576, 0.0
    %v723 = vmax.f32 %v581, 0.0
    %v724 = vmax.f32 %v586, 0.0
    %v725 = vmax.f32 %v591, 0.0
    %v726 = vmax.f32 %v596, 0.0
    %v727 = vmax.f32 %v601, 0.0
    %v728 = vmax.f32 %v606, 0.0
    %v729 = vmax.f32 %v611, 0.0
    %v730 = vmax.f32 %v616, 0.0
    %v731 = vmax.f32 %v621, 0.0
    %v732 = vmax.f32 %v626, 0.0
    %v733 = vmax.f32 %v631, 0.0
    %v734 = vmax.f32 %v636, 0.0
    %v735 = vmax.f32 %v641, 0.0
    %v736 = vmax.f32 %v646, 0.0
    %v737 = vmax.f32 %v651, 0.0
    %v738 = vmax.f32 %v656, 0.0
    %v739 = vmax.f32 %v661, 0.0
    %v740 = vmax.f32 %v666, 0.0
    %v741 = vmax.f32 %v671, 0.0
    %v742 = vmax.f32 %v676, 0.0
    %v743 = vld [vmem:[%s3] sm:$0xff]
    %v744 = vld [vmem:[%s3 + $0x8] sm:$0xff]
    %v745 = vld [vmem:[%s3 + $0x10] sm:$0xff]
    %v746 = vld [vmem:[%s3 + $0x18] sm:$0xff]
    %v747 = vld [vmem:[%s3 + $0x20] sm:$0xff]
    %v748 = vld [vmem:[%s3 + $0x28] sm:$0xff]
    %v749 = vld [vmem:[%s3 + $0x30] sm:$0xff]
    %v750 = vld [vmem:[%s3 + $0x38] sm:$0xff]
    %v751 = vld [vmem:[%s3 + $0x40] sm:$0xff]
    %v752 = vld [vmem:[%s3 + $0x48] sm:$0xff]
    %v753 = vld [vmem:[%s3 + $0x50] sm:$0xff]
    %v754 = vld [vmem:[%s3 + $0x58] sm:$0xff]
    %v755 = vld [vmem:[%s3 + $0x60] sm:$0xff]
    %v756 = vld [vmem:[%s3 + $0x68] sm:$0xff]
    %v757 = vld [vmem:[%s3 + $0x70] sm:$0xff]
    %v758 = vld [vmem:[%s3 + $0x78] sm:$0xff]
    %v759 = vld [vmem:[%s4] sm:$0x1]
    %v761 = vlaneseq
    %v762 = vshrl.u32 %v761, 7
    %v763 = vsub.s32 0, %v762
    %v764 = vrot.slane %v759, %v763
    %766 = vmatprep.subr.mxu0 0.0
    %767 = vmatpush1.msra.mxu0 %v758
    %768 = vmatprep.subr.mxu0 0.0
    %769 = vmatpush1.msra.mxu0 %v757
    %770 = vmatprep.subr.mxu0 0.0
    %771 = vmatpush1.msra.mxu0 %v756
    %772 = vmatprep.subr.mxu0 0.0
    %773 = vmatpush1.msra.mxu0 %v755
    %774 = vmatprep.subr.mxu0 0.0
    %775 = vmatpush1.msra.mxu0 %v754
    %776 = vmatprep.subr.mxu0 0.0
    %777 = vmatpush1.msra.mxu0 %v753
    %778 = vmatprep.subr.mxu0 0.0
    %779 = vmatpush1.msra.mxu0 %v752
    %780 = vmatprep.subr.mxu0 0.0
    %781 = vmatpush1.msra.mxu0 %v751
    %782 = vmatprep.subr.mxu0 0.0
    %783 = vmatpush1.msra.mxu0 %v750
    %784 = vmatprep.subr.mxu0 0.0
    %785 = vmatpush1.msra.mxu0 %v749
    %786 = vmatprep.subr.mxu0 0.0
    %787 = vmatpush1.msra.mxu0 %v748
    %788 = vmatprep.subr.mxu0 0.0
    %789 = vmatpush1.msra.mxu0 %v747
    %790 = vmatprep.subr.mxu0 0.0
    %791 = vmatpush1.msra.mxu0 %v746
    %792 = vmatprep.subr.mxu0 0.0
    %793 = vmatpush1.msra.mxu0 %v745
    %794 = vmatprep.subr.mxu0 0.0
    %795 = vmatpush1.msra.mxu0 %v744
    %796 = vmatprep.subr.mxu0 0.0
    %797 = vmatpush1.msra.mxu0 %v743
    %798 = vmatprep.subr.mxu0 0.0
    %799 = vmatpush2.msra.mxu0 0.0
    %800 = vmatprep.subr.mxu0 0.0
    %801 = vmatpush2.msra.mxu0 0.0
    %802 = vmatprep.subr.mxu0 0.0
    %803 = vmatpush2.msra.mxu0 0.0
    %804 = vmatprep.subr.mxu0 0.0
    %805 = vmatpush2.msra.mxu0 0.0
    %806 = vmatprep.subr.mxu0 0.0
    %807 = vmatpush2.msra.mxu0 0.0
    %808 = vmatprep.subr.mxu0 0.0
    %809 = vmatpush2.msra.mxu0 0.0
    %810 = vmatprep.subr.mxu0 0.0
    %811 = vmatpush2.msra.mxu0 0.0
    %812 = vmatprep.subr.mxu0 0.0
    %813 = vmatpush2.msra.mxu0 0.0
    %814 = vmatprep.subr.mxu0 0.0
    %815 = vmatpush2.msra.mxu0 0.0
    %816 = vmatprep.subr.mxu0 0.0
    %817 = vmatpush2.msra.mxu0 0.0
    %818 = vmatprep.subr.mxu0 0.0
    %819 = vmatpush2.msra.mxu0 0.0
    %820 = vmatprep.subr.mxu0 0.0
    %821 = vmatpush2.msra.mxu0 0.0
    %822 = vmatprep.subr.mxu0 0.0
    %823 = vmatpush2.msra.mxu0 0.0
    %824 = vmatprep.subr.mxu0 0.0
    %825 = vmatpush2.msra.mxu0 0.0
    %826 = vmatprep.subr.mxu0 0.0
    %827 = vmatpush2.msra.mxu0 0.0
    %828 = vmatprep.subr.mxu0 0.0
    %829 = vmatpush2.msra.mxu0 0.0
    %830 = vmatprep.mubr.f32.mxu0 0.0
    %831 = vmatmul.mubr.f32.gmra.mxu0 %v679
    %v832 = vpop.f32.mrf.mxu0
    %v833 = vadd.f32 %v764, %v832
    %v834 = vpop.f32.mrf.mxu0
    %835 = vmatprep.mubr.f32.mxu0 0.0
    %836 = vmatmul.mubr.f32.gmra.mxu0 %v680
    %v837 = vpop.f32.mrf.mxu0
    %v838 = vadd.f32 %v764, %v837
    %v839 = vpop.f32.mrf.mxu0
    %840 = vmatprep.mubr.f32.mxu0 0.0
    %841 = vmatmul.mubr.f32.gmra.mxu0 %v681
    %v842 = vpop.f32.mrf.mxu0
    %v843 = vadd.f32 %v764, %v842
    %v844 = vpop.f32.mrf.mxu0
    %845 = vmatprep.mubr.f32.mxu0 0.0
    %846 = vmatmul.mubr.f32.gmra.mxu0 %v682
    %v847 = vpop.f32.mrf.mxu0
    %v848 = vadd.f32 %v764, %v847
    %v849 = vpop.f32.mrf.mxu0
    %850 = vmatprep.mubr.f32.mxu0 0.0
    %851 = vmatmul.mubr.f32.gmra.mxu0 %v683
    %v852 = vpop.f32.mrf.mxu0
    %v853 = vadd.f32 %v764, %v852
    %v854 = vpop.f32.mrf.mxu0
    %855 = vmatprep.mubr.f32.mxu0 0.0
    %856 = vmatmul.mubr.f32.gmra.mxu0 %v684
    %v857 = vpop.f32.mrf.mxu0
    %v858 = vadd.f32 %v764, %v857
    %v859 = vpop.f32.mrf.mxu0
    %860 = vmatprep.mubr.f32.mxu0 0.0
    %861 = vmatmul.mubr.f32.gmra.mxu0 %v685
    %v862 = vpop.f32.mrf.mxu0
    %v863 = vadd.f32 %v764, %v862
    %v864 = vpop.f32.mrf.mxu0
    %865 = vmatprep.mubr.f32.mxu0 0.0
    %866 = vmatmul.mubr.f32.gmra.mxu0 %v686
    %v867 = vpop.f32.mrf.mxu0
    %v868 = vadd.f32 %v764, %v867
    %v869 = vpop.f32.mrf.mxu0
    %870 = vmatprep.mubr.f32.mxu0 0.0
    %871 = vmatmul.mubr.f32.gmra.mxu0 %v687
    %v872 = vpop.f32.mrf.mxu0
    %v873 = vadd.f32 %v764, %v872
    %v874 = vpop.f32.mrf.mxu0
    %875 = vmatprep.mubr.f32.mxu0 0.0
    %876 = vmatmul.mubr.f32.gmra.mxu0 %v688
    %v877 = vpop.f32.mrf.mxu0
    %v878 = vadd.f32 %v764, %v877
    %v879 = vpop.f32.mrf.mxu0
    %880 = vmatprep.mubr.f32.mxu0 0.0
    %881 = vmatmul.mubr.f32.gmra.mxu0 %v689
    %v882 = vpop.f32.mrf.mxu0
    %v883 = vadd.f32 %v764, %v882
    %v884 = vpop.f32.mrf.mxu0
    %885 = vmatprep.mubr.f32.mxu0 0.0
    %886 = vmatmul.mubr.f32.gmra.mxu0 %v690
    %v887 = vpop.f32.mrf.mxu0
    %v888 = vadd.f32 %v764, %v887
    %v889 = vpop.f32.mrf.mxu0
    %890 = vmatprep.mubr.f32.mxu0 0.0
    %891 = vmatmul.mubr.f32.gmra.mxu0 %v691
    %v892 = vpop.f32.mrf.mxu0
    %v893 = vadd.f32 %v764, %v892
    %v894 = vpop.f32.mrf.mxu0
    %895 = vmatprep.mubr.f32.mxu0 0.0
    %896 = vmatmul.mubr.f32.gmra.mxu0 %v692
    %v897 = vpop.f32.mrf.mxu0
    %v898 = vadd.f32 %v764, %v897
    %v899 = vpop.f32.mrf.mxu0
    %900 = vmatprep.mubr.f32.mxu0 0.0
    %901 = vmatmul.mubr.f32.gmra.mxu0 %v693
    %v902 = vpop.f32.mrf.mxu0
    %v903 = vadd.f32 %v764, %v902
    %v904 = vpop.f32.mrf.mxu0
    %905 = vmatprep.mubr.f32.mxu0 0.0
    %906 = vmatmul.mubr.f32.gmra.mxu0 %v694
    %v907 = vpop.f32.mrf.mxu0
    %v908 = vadd.f32 %v764, %v907
    %v909 = vpop.f32.mrf.mxu0
    %910 = vmatprep.mubr.f32.mxu0 0.0
    %911 = vmatmul.mubr.f32.gmra.mxu0 %v695
    %v912 = vpop.f32.mrf.mxu0
    %v913 = vadd.f32 %v764, %v912
    %v914 = vpop.f32.mrf.mxu0
    %915 = vmatprep.mubr.f32.mxu0 0.0
    %916 = vmatmul.mubr.f32.gmra.mxu0 %v696
    %v917 = vpop.f32.mrf.mxu0
    %v918 = vadd.f32 %v764, %v917
    %v919 = vpop.f32.mrf.mxu0
    %920 = vmatprep.mubr.f32.mxu0 0.0
    %921 = vmatmul.mubr.f32.gmra.mxu0 %v697
    %v922 = vpop.f32.mrf.mxu0
    %v923 = vadd.f32 %v764, %v922
    %v924 = vpop.f32.mrf.mxu0
    %925 = vmatprep.mubr.f32.mxu0 0.0
    %926 = vmatmul.mubr.f32.gmra.mxu0 %v698
    %v927 = vpop.f32.mrf.mxu0
    %v928 = vadd.f32 %v764, %v927
    %v929 = vpop.f32.mrf.mxu0
    %930 = vmatprep.mubr.f32.mxu0 0.0
    %931 = vmatmul.mubr.f32.gmra.mxu0 %v699
    %v932 = vpop.f32.mrf.mxu0
    %v933 = vadd.f32 %v764, %v932
    %v934 = vpop.f32.mrf.mxu0
    %935 = vmatprep.mubr.f32.mxu0 0.0
    %936 = vmatmul.mubr.f32.gmra.mxu0 %v700
    %v937 = vpop.f32.mrf.mxu0
    %v938 = vadd.f32 %v764, %v937
    %v939 = vpop.f32.mrf.mxu0
    %940 = vmatprep.mubr.f32.mxu0 0.0
    %941 = vmatmul.mubr.f32.gmra.mxu0 %v701
    %v942 = vpop.f32.mrf.mxu0
    %v943 = vadd.f32 %v764, %v942
    %v944 = vpop.f32.mrf.mxu0
    %945 = vmatprep.mubr.f32.mxu0 0.0
    %946 = vmatmul.mubr.f32.gmra.mxu0 %v702
    %v947 = vpop.f32.mrf.mxu0
    %v948 = vadd.f32 %v764, %v947
    %v949 = vpop.f32.mrf.mxu0
    %950 = vmatprep.mubr.f32.mxu0 0.0
    %951 = vmatmul.mubr.f32.gmra.mxu0 %v703
    %v952 = vpop.f32.mrf.mxu0
    %v953 = vadd.f32 %v764, %v952
    %v954 = vpop.f32.mrf.mxu0
    %955 = vmatprep.mubr.f32.mxu0 0.0
    %956 = vmatmul.mubr.f32.gmra.mxu0 %v704
    %v957 = vpop.f32.mrf.mxu0
    %v958 = vadd.f32 %v764, %v957
    %v959 = vpop.f32.mrf.mxu0
    %960 = vmatprep.mubr.f32.mxu0 0.0
    %961 = vmatmul.mubr.f32.gmra.mxu0 %v705
    %v962 = vpop.f32.mrf.mxu0
    %v963 = vadd.f32 %v764, %v962
    %v964 = vpop.f32.mrf.mxu0
    %965 = vmatprep.mubr.f32.mxu0 0.0
    %966 = vmatmul.mubr.f32.gmra.mxu0 %v706
    %v967 = vpop.f32.mrf.mxu0
    %v968 = vadd.f32 %v764, %v967
    %v969 = vpop.f32.mrf.mxu0
    %970 = vmatprep.mubr.f32.mxu0 0.0
    %971 = vmatmul.mubr.f32.gmra.mxu0 %v707
    %v972 = vpop.f32.mrf.mxu0
    %v973 = vadd.f32 %v764, %v972
    %v974 = vpop.f32.mrf.mxu0
    %975 = vmatprep.mubr.f32.mxu0 0.0
    %976 = vmatmul.mubr.f32.gmra.mxu0 %v708
    %v977 = vpop.f32.mrf.mxu0
    %v978 = vadd.f32 %v764, %v977
    %v979 = vpop.f32.mrf.mxu0
    %980 = vmatprep.mubr.f32.mxu0 0.0
    %981 = vmatmul.mubr.f32.gmra.mxu0 %v709
    %v982 = vpop.f32.mrf.mxu0
    %v983 = vadd.f32 %v764, %v982
    %v984 = vpop.f32.mrf.mxu0
    %985 = vmatprep.mubr.f32.mxu0 0.0
    %986 = vmatmul.mubr.f32.gmra.mxu0 %v710
    %v987 = vpop.f32.mrf.mxu0
    %v988 = vadd.f32 %v764, %v987
    %v989 = vpop.f32.mrf.mxu0
    %990 = vmatprep.mubr.f32.mxu0 0.0
    %991 = vmatmul.mubr.f32.gmra.mxu0 %v711
    %v992 = vpop.f32.mrf.mxu0
    %v993 = vadd.f32 %v764, %v992
    %v994 = vpop.f32.mrf.mxu0
    %995 = vmatprep.mubr.f32.mxu0 0.0
    %996 = vmatmul.mubr.f32.gmra.mxu0 %v712
    %v997 = vpop.f32.mrf.mxu0
    %v998 = vadd.f32 %v764, %v997
    %v999 = vpop.f32.mrf.mxu0
    %1000 = vmatprep.mubr.f32.mxu0 0.0
    %1001 = vmatmul.mubr.f32.gmra.mxu0 %v713
    %v1002 = vpop.f32.mrf.mxu0
    %v1003 = vadd.f32 %v764, %v1002
    %v1004 = vpop.f32.mrf.mxu0
    %1005 = vmatprep.mubr.f32.mxu0 0.0
    %1006 = vmatmul.mubr.f32.gmra.mxu0 %v714
    %v1007 = vpop.f32.mrf.mxu0
    %v1008 = vadd.f32 %v764, %v1007
    %v1009 = vpop.f32.mrf.mxu0
    %1010 = vmatprep.mubr.f32.mxu0 0.0
    %1011 = vmatmul.mubr.f32.gmra.mxu0 %v715
    %v1012 = vpop.f32.mrf.mxu0
    %v1013 = vadd.f32 %v764, %v1012
    %v1014 = vpop.f32.mrf.mxu0
    %1015 = vmatprep.mubr.f32.mxu0 0.0
    %1016 = vmatmul.mubr.f32.gmra.mxu0 %v716
    %v1017 = vpop.f32.mrf.mxu0
    %v1018 = vadd.f32 %v764, %v1017
    %v1019 = vpop.f32.mrf.mxu0
    %1020 = vmatprep.mubr.f32.mxu0 0.0
    %1021 = vmatmul.mubr.f32.gmra.mxu0 %v717
    %v1022 = vpop.f32.mrf.mxu0
    %v1023 = vadd.f32 %v764, %v1022
    %v1024 = vpop.f32.mrf.mxu0
    %1025 = vmatprep.mubr.f32.mxu0 0.0
    %1026 = vmatmul.mubr.f32.gmra.mxu0 %v718
    %v1027 = vpop.f32.mrf.mxu0
    %v1028 = vadd.f32 %v764, %v1027
    %v1029 = vpop.f32.mrf.mxu0
    %1030 = vmatprep.mubr.f32.mxu0 0.0
    %1031 = vmatmul.mubr.f32.gmra.mxu0 %v719
    %v1032 = vpop.f32.mrf.mxu0
    %v1033 = vadd.f32 %v764, %v1032
    %v1034 = vpop.f32.mrf.mxu0
    %1035 = vmatprep.mubr.f32.mxu0 0.0
    %1036 = vmatmul.mubr.f32.gmra.mxu0 %v720
    %v1037 = vpop.f32.mrf.mxu0
    %v1038 = vadd.f32 %v764, %v1037
    %v1039 = vpop.f32.mrf.mxu0
    %1040 = vmatprep.mubr.f32.mxu0 0.0
    %1041 = vmatmul.mubr.f32.gmra.mxu0 %v721
    %v1042 = vpop.f32.mrf.mxu0
    %v1043 = vadd.f32 %v764, %v1042
    %v1044 = vpop.f32.mrf.mxu0
    %1045 = vmatprep.mubr.f32.mxu0 0.0
    %1046 = vmatmul.mubr.f32.gmra.mxu0 %v722
    %v1047 = vpop.f32.mrf.mxu0
    %v1048 = vadd.f32 %v764, %v1047
    %v1049 = vpop.f32.mrf.mxu0
    %1050 = vmatprep.mubr.f32.mxu0 0.0
    %1051 = vmatmul.mubr.f32.gmra.mxu0 %v723
    %v1052 = vpop.f32.mrf.mxu0
    %v1053 = vadd.f32 %v764, %v1052
    %v1054 = vpop.f32.mrf.mxu0
    %1055 = vmatprep.mubr.f32.mxu0 0.0
    %1056 = vmatmul.mubr.f32.gmra.mxu0 %v724
    %v1057 = vpop.f32.mrf.mxu0
    %v1058 = vadd.f32 %v764, %v1057
    %v1059 = vpop.f32.mrf.mxu0
    %1060 = vmatprep.mubr.f32.mxu0 0.0
    %1061 = vmatmul.mubr.f32.gmra.mxu0 %v725
    %v1062 = vpop.f32.mrf.mxu0
    %v1063 = vadd.f32 %v764, %v1062
    %v1064 = vpop.f32.mrf.mxu0
    %1065 = vmatprep.mubr.f32.mxu0 0.0
    %1066 = vmatmul.mubr.f32.gmra.mxu0 %v726
    %v1067 = vpop.f32.mrf.mxu0
    %v1068 = vadd.f32 %v764, %v1067
    %v1069 = vpop.f32.mrf.mxu0
    %1070 = vmatprep.mubr.f32.mxu0 0.0
    %1071 = vmatmul.mubr.f32.gmra.mxu0 %v727
    %v1072 = vpop.f32.mrf.mxu0
    %v1073 = vadd.f32 %v764, %v1072
    %v1074 = vpop.f32.mrf.mxu0
    %1075 = vmatprep.mubr.f32.mxu0 0.0
    %1076 = vmatmul.mubr.f32.gmra.mxu0 %v728
    %v1077 = vpop.f32.mrf.mxu0
    %v1078 = vadd.f32 %v764, %v1077
    %v1079 = vpop.f32.mrf.mxu0
    %1080 = vmatprep.mubr.f32.mxu0 0.0
    %1081 = vmatmul.mubr.f32.gmra.mxu0 %v729
    %v1082 = vpop.f32.mrf.mxu0
    %v1083 = vadd.f32 %v764, %v1082
    %v1084 = vpop.f32.mrf.mxu0
    %1085 = vmatprep.mubr.f32.mxu0 0.0
    %1086 = vmatmul.mubr.f32.gmra.mxu0 %v730
    %v1087 = vpop.f32.mrf.mxu0
    %v1088 = vadd.f32 %v764, %v1087
    %v1089 = vpop.f32.mrf.mxu0
    %1090 = vmatprep.mubr.f32.mxu0 0.0
    %1091 = vmatmul.mubr.f32.gmra.mxu0 %v731
    %v1092 = vpop.f32.mrf.mxu0
    %v1093 = vadd.f32 %v764, %v1092
    %v1094 = vpop.f32.mrf.mxu0
    %1095 = vmatprep.mubr.f32.mxu0 0.0
    %1096 = vmatmul.mubr.f32.gmra.mxu0 %v732
    %v1097 = vpop.f32.mrf.mxu0
    %v1098 = vadd.f32 %v764, %v1097
    %v1099 = vpop.f32.mrf.mxu0
    %1100 = vmatprep.mubr.f32.mxu0 0.0
    %1101 = vmatmul.mubr.f32.gmra.mxu0 %v733
    %v1102 = vpop.f32.mrf.mxu0
    %v1103 = vadd.f32 %v764, %v1102
    %v1104 = vpop.f32.mrf.mxu0
    %1105 = vmatprep.mubr.f32.mxu0 0.0
    %1106 = vmatmul.mubr.f32.gmra.mxu0 %v734
    %v1107 = vpop.f32.mrf.mxu0
    %v1108 = vadd.f32 %v764, %v1107
    %v1109 = vpop.f32.mrf.mxu0
    %1110 = vmatprep.mubr.f32.mxu0 0.0
    %1111 = vmatmul.mubr.f32.gmra.mxu0 %v735
    %v1112 = vpop.f32.mrf.mxu0
    %v1113 = vadd.f32 %v764, %v1112
    %v1114 = vpop.f32.mrf.mxu0
    %1115 = vmatprep.mubr.f32.mxu0 0.0
    %1116 = vmatmul.mubr.f32.gmra.mxu0 %v736
    %v1117 = vpop.f32.mrf.mxu0
    %v1118 = vadd.f32 %v764, %v1117
    %v1119 = vpop.f32.mrf.mxu0
    %1120 = vmatprep.mubr.f32.mxu0 0.0
    %1121 = vmatmul.mubr.f32.gmra.mxu0 %v737
    %v1122 = vpop.f32.mrf.mxu0
    %v1123 = vadd.f32 %v764, %v1122
    %v1124 = vpop.f32.mrf.mxu0
    %1125 = vmatprep.mubr.f32.mxu0 0.0
    %1126 = vmatmul.mubr.f32.gmra.mxu0 %v738
    %v1127 = vpop.f32.mrf.mxu0
    %v1128 = vadd.f32 %v764, %v1127
    %v1129 = vpop.f32.mrf.mxu0
    %1130 = vmatprep.mubr.f32.mxu0 0.0
    %1131 = vmatmul.mubr.f32.gmra.mxu0 %v739
    %v1132 = vpop.f32.mrf.mxu0
    %v1133 = vadd.f32 %v764, %v1132
    %v1134 = vpop.f32.mrf.mxu0
    %1135 = vmatprep.mubr.f32.mxu0 0.0
    %1136 = vmatmul.mubr.f32.gmra.mxu0 %v740
    %v1137 = vpop.f32.mrf.mxu0
    %v1138 = vadd.f32 %v764, %v1137
    %v1139 = vpop.f32.mrf.mxu0
    %1140 = vmatprep.mubr.f32.mxu0 0.0
    %1141 = vmatmul.mubr.f32.gmra.mxu0 %v741
    %v1142 = vpop.f32.mrf.mxu0
    %v1143 = vadd.f32 %v764, %v1142
    %v1144 = vpop.f32.mrf.mxu0
    %1145 = vmatprep.mubr.f32.mxu0 0.0
    %1146 = vmatmul.mubr.f32.gmra.mxu0 %v742
    %v1147 = vpop.f32.mrf.mxu0
    %v1148 = vadd.f32 %v764, %v1147
    %v1149 = vpop.f32.mrf.mxu0
    %1150 = vdwg.mxu0
    %1151 = vst [vmem:[#allocation2] sm:$0xff] %v833
    %1152 = vst [vmem:[#allocation2 + $0x8] sm:$0xff] %v838
    %1153 = vst [vmem:[#allocation2 + $0x10] sm:$0xff] %v843
    %1154 = vst [vmem:[#allocation2 + $0x18] sm:$0xff] %v848
    %1155 = vst [vmem:[#allocation2 + $0x20] sm:$0xff] %v853
    %1156 = vst [vmem:[#allocation2 + $0x28] sm:$0xff] %v858
    %1157 = vst [vmem:[#allocation2 + $0x30] sm:$0xff] %v863
    %1158 = vst [vmem:[#allocation2 + $0x38] sm:$0xff] %v868
    %1159 = vst [vmem:[#allocation2 + $0x40] sm:$0xff] %v873
    %1160 = vst [vmem:[#allocation2 + $0x48] sm:$0xff] %v878
    %1161 = vst [vmem:[#allocation2 + $0x50] sm:$0xff] %v883
    %1162 = vst [vmem:[#allocation2 + $0x58] sm:$0xff] %v888
    %1163 = vst [vmem:[#allocation2 + $0x60] sm:$0xff] %v893
    %1164 = vst [vmem:[#allocation2 + $0x68] sm:$0xff] %v898
    %1165 = vst [vmem:[#allocation2 + $0x70] sm:$0xff] %v903
    %1166 = vst [vmem:[#allocation2 + $0x78] sm:$0xff] %v908
    %1167 = vst [vmem:[#allocation2 + $0x80] sm:$0xff] %v913
    %1168 = vst [vmem:[#allocation2 + $0x88] sm:$0xff] %v918
    %1169 = vst [vmem:[#allocation2 + $0x90] sm:$0xff] %v923
    %1170 = vst [vmem:[#allocation2 + $0x98] sm:$0xff] %v928
    %1171 = vst [vmem:[#allocation2 + $0xa0] sm:$0xff] %v933
    %1172 = vst [vmem:[#allocation2 + $0xa8] sm:$0xff] %v938
    %1173 = vst [vmem:[#allocation2 + $0xb0] sm:$0xff] %v943
    %1174 = vst [vmem:[#allocation2 + $0xb8] sm:$0xff] %v948
    %1175 = vst [vmem:[#allocation2 + $0xc0] sm:$0xff] %v953
    %1176 = vst [vmem:[#allocation2 + $0xc8] sm:$0xff] %v958
    %1177 = vst [vmem:[#allocation2 + $0xd0] sm:$0xff] %v963
    %1178 = vst [vmem:[#allocation2 + $0xd8] sm:$0xff] %v968
    %1179 = vst [vmem:[#allocation2 + $0xe0] sm:$0xff] %v973
    %1180 = vst [vmem:[#allocation2 + $0xe8] sm:$0xff] %v978
    %1181 = vst [vmem:[#allocation2 + $0xf0] sm:$0xff] %v983
    %1182 = vst [vmem:[#allocation2 + $0xf8] sm:$0xff] %v988
    %1183 = vst [vmem:[#allocation2 + $0x100] sm:$0xff] %v993
    %1184 = vst [vmem:[#allocation2 + $0x108] sm:$0xff] %v998
    %1185 = vst [vmem:[#allocation2 + $0x110] sm:$0xff] %v1003
    %1186 = vst [vmem:[#allocation2 + $0x118] sm:$0xff] %v1008
    %1187 = vst [vmem:[#allocation2 + $0x120] sm:$0xff] %v1013
    %1188 = vst [vmem:[#allocation2 + $0x128] sm:$0xff] %v1018
    %1189 = vst [vmem:[#allocation2 + $0x130] sm:$0xff] %v1023
    %1190 = vst [vmem:[#allocation2 + $0x138] sm:$0xff] %v1028
    %1191 = vst [vmem:[#allocation2 + $0x140] sm:$0xff] %v1033
    %1192 = vst [vmem:[#allocation2 + $0x148] sm:$0xff] %v1038
    %1193 = vst [vmem:[#allocation2 + $0x150] sm:$0xff] %v1043
    %1194 = vst [vmem:[#allocation2 + $0x158] sm:$0xff] %v1048
    %1195 = vst [vmem:[#allocation2 + $0x160] sm:$0xff] %v1053
    %1196 = vst [vmem:[#allocation2 + $0x168] sm:$0xff] %v1058
    %1197 = vst [vmem:[#allocation2 + $0x170] sm:$0xff] %v1063
    %1198 = vst [vmem:[#allocation2 + $0x178] sm:$0xff] %v1068
    %1199 = vst [vmem:[#allocation2 + $0x180] sm:$0xff] %v1073
    %1200 = vst [vmem:[#allocation2 + $0x188] sm:$0xff] %v1078
    %1201 = vst [vmem:[#allocation2 + $0x190] sm:$0xff] %v1083
    %1202 = vst [vmem:[#allocation2 + $0x198] sm:$0xff] %v1088
    %1203 = vst [vmem:[#allocation2 + $0x1a0] sm:$0xff] %v1093
    %1204 = vst [vmem:[#allocation2 + $0x1a8] sm:$0xff] %v1098
    %1205 = vst [vmem:[#allocation2 + $0x1b0] sm:$0xff] %v1103
    %1206 = vst [vmem:[#allocation2 + $0x1b8] sm:$0xff] %v1108
    %1207 = vst [vmem:[#allocation2 + $0x1c0] sm:$0xff] %v1113
    %1208 = vst [vmem:[#allocation2 + $0x1c8] sm:$0xff] %v1118
    %1209 = vst [vmem:[#allocation2 + $0x1d0] sm:$0xff] %v1123
    %1210 = vst [vmem:[#allocation2 + $0x1d8] sm:$0xff] %v1128
    %1211 = vst [vmem:[#allocation2 + $0x1e0] sm:$0xff] %v1133
    %1212 = vst [vmem:[#allocation2 + $0x1e8] sm:$0xff] %v1138
    %1213 = vst [vmem:[#allocation2 + $0x1f0] sm:$0xff] %v1143
    %1214 = vst [vmem:[#allocation2 + $0x1f8] sm:$0xff] %v1148
    // Predicated region
    $region22: #{tpu_custom_call.1} parent=1 // pred_check
      _
    $region23: #{tpu_custom_call.1} parent=1 // pred_check_branch
      %1216 = sbr.rel (0) target = $region25
    $region24: #{tpu_custom_call.1} parent=1 // pred_region
      %s1218 = ssub.s32 8192, 8192
      %1219 = vsyncadd [#allocation3], %s1218
      %s1220 = sshll.u32 [#allocation2], 4
      %s1221 = int_to_ptr.vmem [resolvable:$true] %s1220
      %1226 = dma.vmem_to_hbm [thread:$0]  %s1221, 8192, %s5, [#allocation3], 128, 128, 8
    $region25: #{tpu_custom_call.1} parent=1 // pred_fallthru
      _
    // Predicated region
    $region26: #{tpu_custom_call.1} parent=1 // pred_check
      _
    $region27: #{tpu_custom_call.1} parent=1 // pred_check_branch
      %1228 = sbr.rel (0) target = $region29
    $region28: #{tpu_custom_call.1} parent=1 // pred_region
      %1229 = dma.done [#allocation3], 8192
    $region29: #{tpu_custom_call.1} parent=1 // pred_fallthru
      _
    %1230 = vsyncpa [#allocation3], 1

</llo_original>
